<compile_context>
chip_gen: v7x
topology: tpu7x:2x2x1
jax: 0.10.0
libtpu: 0.0.40
codegen_flags: <defaults>
</compile_context>

<pallas_src>
import functools

import jax
import jax.numpy as jnp
from jax.experimental import pallas as pl
from jax.experimental.pallas import tpu as pltpu

EPS = 1e-5


def _debottleneck_kernel(x_ref, w1_ref, w2_ref, w3_ref, bn_ref, mask_ref,
                         o_ref, patch_ref, *, W):
    """Whole DeBottleneck block in one invocation (channel-major layout).

    x_ref    : (Cin, S)            f32, S = N*H*W (lane-dense)
    w1_ref   : (planes, Cin)       f32  -- conv1 (1x1 transposed conv) as matmul
    w2_ref   : (planes, Kpad)      f32  -- conv2 (3x3, s=1, p=1) im2col weights, K padded
    w3_ref   : (Cin, planes)       f32  -- conv3 (1x1 transposed conv) as matmul
    bn_ref   : (4*planes+2*Cin, 1) f32  -- packed [g1,b1,g2,b2,g3,b3]
    mask_ref : (9, S)              f32  -- precomputed border masks, tap order (oy, ox)
    o_ref    : (Cin, S)            f32
    patch_ref: (Kpad, S)           f32  -- VMEM scratch for the im2col patches
    """
    planes, cin = w1_ref.shape
    _, S = x_ref.shape
    k9 = 9 * planes
    k_pad = patch_ref.shape[0]

    x = x_ref[...]                                   # (Cin, S) f32

    def bn_act(y, off, n, relu):
        # Training-mode BatchNorm2d folded into a per-channel scale/shift:
        #   s = g * rsqrt(var + eps),  t = b - mean * s,  z = y*s + t
        # Stats over the N*H*W lane axis; single reduction pass (var = E[y^2]-E[y]^2).
        g = bn_ref[pl.ds(off, n), :]                 # (n, 1)
        b = bn_ref[pl.ds(off + n, n), :]             # (n, 1)
        mean = jnp.mean(y, axis=1, keepdims=True)
        var = jnp.mean(y * y, axis=1, keepdims=True) - mean * mean
        s = g * jax.lax.rsqrt(var + EPS)             # rsqrt -> EUP slot
        t = b - mean * s
        z = y * s + t                                # 2 VPU ops / element
        return jnp.maximum(z, 0.0) if relu else z

    # ---- conv1: ConvTranspose2d(k=1)  ==  (planes, Cin) @ (Cin, S) ----------
    y1 = jnp.dot(w1_ref[...], x, preferred_element_type=jnp.float32)
    h1 = bn_act(y1, 0, planes, relu=True)

    # ---- conv2: ConvTranspose2d(k=3, s=1, p=1) as ONE im2col matmul ---------
    # Each of the 9 taps is a lane-rolled copy of h1 times its precomputed border
    # mask, written as a static sublane slice into the K-padded scratch.  The
    # masks zero exactly the positions whose tap (|shift| <= W+1) left the image,
    # which also covers every roll that wrapped across an image/array boundary.
    if k_pad > k9:   # zero the K pad rows once (w2 pad cols are zero too)
        patch_ref[pl.ds(k9, k_pad - k9), :] = jnp.zeros((k_pad - k9, S), jnp.float32)
    t = 0
    for oy in (-1, 0, 1):
        for ox in (-1, 0, 1):
            d = oy * W + ox
            shifted = h1 if d == 0 else jnp.roll(h1, -d, axis=1)
            patch_ref[pl.ds(t * planes, planes), :] = shifted * mask_ref[pl.ds(t, 1), :]
            t += 1
    y2 = jnp.dot(w2_ref[...], patch_ref[...], preferred_element_type=jnp.float32)
    h2 = bn_act(y2, 2 * planes, planes, relu=True)

    # ---- conv3: ConvTranspose2d(k=1)  ==  (Cin, planes) @ (planes, S) -------
    y3 = jnp.dot(w3_ref[...], h2, preferred_element_type=jnp.float32)
    h3 = bn_act(y3, 4 * planes, cin, relu=False)

    # ---- residual add + relu; (Cin, S) store is lane-dense ------------------
    o_ref[...] = jnp.maximum(h3 + x, 0.0).astype(o_ref.dtype)


def debottleneck_pallas_cm(x_cm, w1, w2, w3, g1, b1, g2, b2, g3, b3, *, H, W):
    """Channel-major entry point.  x_cm: (Cin, N*H*W) f32.  Weights in PyTorch
    ConvTranspose2d layout (in_ch, out_ch, kH, kW).  Returns (Cin, N*H*W) f32."""
    cin, S = x_cm.shape
    planes = w1.shape[1]
    assert w1.shape[0] == cin and w3.shape[:2] == (planes, cin)
    assert S % (H * W) == 0

    # ---- effective matmul weights (f32) -------------------------------------
    # 1x1 transposed conv: out[d] = sum_c x[c] * w[c, d]  ->  W_eff[d, c] = w[c, d]
    w1e = jnp.transpose(w1[:, :, 0, 0], (1, 0))                      # (planes, Cin)
    w3e = jnp.transpose(w3[:, :, 0, 0], (1, 0))                      # (Cin, planes)
    # 3x3 transposed conv (s=1,p=1) == correlation with channel-swapped, flipped kernel.
    w2_eq = jnp.transpose(w2, (1, 0, 2, 3))[:, :, ::-1, ::-1]        # (co, ci, ky, kx)
    w2e = jnp.transpose(w2_eq, (0, 2, 3, 1)).reshape(planes, 9 * planes)  # K = (ky,kx,ci)
    k_pad = ((9 * planes + 7) // 8) * 8                              # f32 sublane pack
    w2e = jnp.pad(w2e, ((0, 0), (0, k_pad - 9 * planes)))            # zero-pad K

    # ---- pack all six BN affine vectors into one (4p+2Cin, 1) column --------
    bn_pack = jnp.concatenate([g1, b1, g2, b2, g3, b3]).reshape(-1, 1).astype(jnp.float32)

    # ---- precompute the 9 border masks (depend only on H, W, S) -------------
    pos = jnp.arange(S, dtype=jnp.int32)
    hh = (pos % (H * W)) // W
    ww = pos % W
    masks = []
    for oy in (-1, 0, 1):
        for ox in (-1, 0, 1):
            masks.append((hh + oy >= 0) & (hh + oy < H) &
                         (ww + ox >= 0) & (ww + ox < W))
    mask9 = jnp.stack(masks, axis=0).astype(jnp.float32)             # (9, S)

    # ---- scoped-VMEM limit from the actual working set (NOT 64 MiB) ---------
    work_set = 4 * S * (2 * cin + k_pad + 9 + 4 * planes + 2 * cin) + (1 << 16)
    vmem_limit = int(min(max(8 * work_set, 4 << 20), 32 << 20))

    vmem = pl.BlockSpec(memory_space=pltpu.MemorySpace.VMEM)
    kern = functools.partial(_debottleneck_kernel, W=W)
    return pl.pallas_call(
        kern,
        out_shape=jax.ShapeDtypeStruct((cin, S), jnp.float32),
        in_specs=[vmem] * 6,
        out_specs=vmem,
        scratch_shapes=[pltpu.VMEM((k_pad, S), jnp.float32)],
        compiler_params=pltpu.CompilerParams(vmem_limit_bytes=vmem_limit),
    )(x_cm, w1e, w2e, w3e, bn_pack, mask9)


def debottleneck_pallas(x_nchw, w1, w2, w3, g1, b1, g2, b2, g3, b3):
    """NCHW adapter.  In a full decoder, keep activations channel-major between
    blocks (call debottleneck_pallas_cm directly) so this relayout is paid once
    per network rather than once per block."""
    N, Cin, H, W = x_nchw.shape
    x_cm = jnp.transpose(x_nchw, (1, 0, 2, 3)).reshape(Cin, N * H * W)
    out_cm = debottleneck_pallas_cm(x_cm, w1, w2, w3, g1, b1, g2, b2, g3, b3, H=H, W=W)
    return jnp.transpose(out_cm.reshape(Cin, N, H, W), (1, 0, 2, 3))


# ----------------------------- pure-JAX reference -----------------------------
def debottleneck_ref(x, w1, w2, w3, g1, b1, g2, b2, g3, b3):
    """Full-f32 reference of the PyTorch module (training-mode BatchNorm)."""
    hi = jax.lax.Precision.HIGHEST

    def deconv1x1(a, w):
        # ConvTranspose2d(k=1): out[n,d,h,w] = sum_c a[n,c,h,w] * w[c,d,0,0]
        return jnp.einsum('nchw,cd->ndhw', a, w[:, :, 0, 0],
                          preferred_element_type=jnp.float32, precision=hi)

    def deconv3x3(a, w):
        # ConvTranspose2d(k=3,s=1,p=1) == conv2d(channel-swapped, flipped kernel, pad 1)
        w_eq = jnp.transpose(w, (1, 0, 2, 3))[:, :, ::-1, ::-1]
        return jax.lax.conv_general_dilated(
            a, w_eq, (1, 1), ((1, 1), (1, 1)),
            dimension_numbers=('NCHW', 'OIHW', 'NCHW'),
            preferred_element_type=jnp.float32, precision=hi)

    def bn(y, g, b):
        m = y.mean(axis=(0, 2, 3), keepdims=True)
        v = ((y - m) ** 2).mean(axis=(0, 2, 3), keepdims=True)
        return (y - m) / jnp.sqrt(v + EPS) * g.reshape(1, -1, 1, 1) \
            + b.reshape(1, -1, 1, 1)

    out = jax.nn.relu(bn(deconv1x1(x, w1), g1, b1))
    out = jax.nn.relu(bn(deconv3x3(out, w2), g2, b2))
    out = bn(deconv1x1(out, w3), g3, b3)
    return jax.nn.relu(out + x)


if __name__ == "__main__":
    # DeBottleneck(inplanes=16, planes=4), stride=1, downsample=None
    # (residual add requires inplanes == planes * expansion = 16).
    N, planes, H, W = 2, 4, 16, 16
    Cin = planes * 4

    key = jax.random.PRNGKey(0)
    ks = jax.random.split(key, 10)
    x = jax.random.normal(ks[0], (N, Cin, H, W), jnp.float32)
    # PyTorch ConvTranspose2d weight layout: (in_channels, out_channels, kH, kW)
    w1 = 0.1 * jax.random.normal(ks[1], (Cin, planes, 1, 1), jnp.float32)     # conv1.weight
    w2 = 0.1 * jax.random.normal(ks[2], (planes, planes, 3, 3), jnp.float32)  # conv2.weight
    w3 = 0.1 * jax.random.normal(ks[3], (planes, Cin, 1, 1), jnp.float32)     # conv3.weight
    g1 = 1.0 + 0.1 * jax.random.normal(ks[4], (planes,), jnp.float32)         # bn1.weight
    b1 = 0.1 * jax.random.normal(ks[5], (planes,), jnp.float32)               # bn1.bias
    g2 = 1.0 + 0.1 * jax.random.normal(ks[6], (planes,), jnp.float32)         # bn2.weight
    b2 = 0.1 * jax.random.normal(ks[7], (planes,), jnp.float32)               # bn2.bias
    g3 = 1.0 + 0.1 * jax.random.normal(ks[8], (Cin,), jnp.float32)            # bn3.weight
    b3 = 0.1 * jax.random.normal(ks[9], (Cin,), jnp.float32)                  # bn3.bias

    args = (x, w1, w2, w3, g1, b1, g2, b2, g3, b3)

    out = jax.block_until_ready(jax.jit(debottleneck_pallas)(*args))
    ref = jax.block_until_ready(jax.jit(debottleneck_ref)(*args))

    assert out.shape == (N, Cin, H, W)
    # 2e-2 tolerance covers a possible reduced-precision f32 matmul lowering on
    # hardware; exact-f32 backends agree to ~1e-5.
    err = jnp.max(jnp.abs(out - ref))
    assert jnp.allclose(out, ref, atol=2e-2, rtol=2e-2), f"max abs err {err}"
    print("KERNEL_OK")
</pallas_src>

<mosaic_0001>
module attributes {stable_mosaic.version = 11 : i64} {
  func.func @_debottleneck_kernel(%arg0: memref<16x512xf32, #tpu.memory_space<vmem>>, %arg1: memref<4x16xf32, #tpu.memory_space<vmem>>, %arg2: memref<4x40xf32, #tpu.memory_space<vmem>>, %arg3: memref<16x4xf32, #tpu.memory_space<vmem>>, %arg4: memref<48x1xf32, #tpu.memory_space<vmem>>, %arg5: memref<9x512xf32, #tpu.memory_space<vmem>>, %arg6: memref<16x512xf32, #tpu.memory_space<vmem>>, %arg7: memref<40x512xf32, #tpu.memory_space<vmem>>) attributes {dimension_semantics = [], scalar_prefetch = 0 : i64, scratch_operands = 1 : i64, tpu.core_type = #tpu.core_type<tc>} {
    %c0 = arith.constant 0 : index
    %c0_0 = arith.constant 0 : index
    %0 = vector.load %arg0[%c0, %c0_0] : memref<16x512xf32, #tpu.memory_space<vmem>>, vector<16x512xf32>
    %c0_1 = arith.constant 0 : index
    %c0_2 = arith.constant 0 : index
    %1 = vector.load %arg1[%c0_1, %c0_2] : memref<4x16xf32, #tpu.memory_space<vmem>>, vector<4x16xf32>
    %cst = arith.constant dense<0.000000e+00> : vector<4x512xf32>
    %2 = tpu.matmul %1, %0, %cst {dimension_numbers = #tpu.dot_dimension_numbers<[1], [0], [0], [1], [0, 0, 1, 1], [], []>} : vector<4x16xf32>, vector<16x512xf32>, vector<4x512xf32> -> vector<4x512xf32>
    %c0_3 = arith.constant 0 : index
    %c0_4 = arith.constant 0 : index
    %3 = vector.load %arg4[%c0_3, %c0_4] : memref<48x1xf32, #tpu.memory_space<vmem>>, vector<4x1xf32>
    %c4 = arith.constant 4 : index
    %c0_5 = arith.constant 0 : index
    %4 = vector.load %arg4[%c4, %c0_5] : memref<48x1xf32, #tpu.memory_space<vmem>>, vector<4x1xf32>
    %cst_6 = arith.constant dense<0.000000e+00> : vector<4xf32>
    %5 = vector.multi_reduction <add>, %2, %cst_6 [1] : vector<4x512xf32> to vector<4xf32>
    %6 = vector.shape_cast %5 : vector<4xf32> to vector<4x1xf32>
    %cst_7 = arith.constant 5.120000e+02 : f32
    %7 = vector.broadcast %cst_7 : f32 to vector<4x1xf32>
    %8 = arith.divf %6, %7 : vector<4x1xf32>
    %9 = arith.mulf %2, %2 : vector<4x512xf32>
    %cst_8 = arith.constant dense<0.000000e+00> : vector<4xf32>
    %10 = vector.multi_reduction <add>, %9, %cst_8 [1] : vector<4x512xf32> to vector<4xf32>
    %11 = vector.shape_cast %10 : vector<4xf32> to vector<4x1xf32>
    %cst_9 = arith.constant 5.120000e+02 : f32
    %12 = vector.broadcast %cst_9 : f32 to vector<4x1xf32>
    %13 = arith.divf %11, %12 : vector<4x1xf32>
    %14 = arith.mulf %8, %8 : vector<4x1xf32>
    %15 = arith.subf %13, %14 : vector<4x1xf32>
    %cst_10 = arith.constant 9.99999974E-6 : f32
    %16 = vector.broadcast %cst_10 : f32 to vector<4x1xf32>
    %17 = arith.addf %15, %16 : vector<4x1xf32>
    %18 = math.rsqrt %17 : vector<4x1xf32>
    %19 = arith.mulf %3, %18 : vector<4x1xf32>
    %20 = arith.mulf %8, %19 : vector<4x1xf32>
    %21 = arith.subf %4, %20 : vector<4x1xf32>
    %22 = vector.broadcast %19 : vector<4x1xf32> to vector<4x512xf32>
    %23 = arith.mulf %2, %22 : vector<4x512xf32>
    %24 = vector.broadcast %21 : vector<4x1xf32> to vector<4x512xf32>
    %25 = arith.addf %23, %24 : vector<4x512xf32>
    %cst_11 = arith.constant 0.000000e+00 : f32
    %26 = vector.broadcast %cst_11 : f32 to vector<4x512xf32>
    %27 = arith.maximumf %25, %26 : vector<4x512xf32>
    %cst_12 = arith.constant 0.000000e+00 : f32
    %28 = vector.broadcast %cst_12 : f32 to vector<4x512xf32>
    %c36 = arith.constant 36 : index
    %c0_13 = arith.constant 0 : index
    %29 = vector.load %arg7[%c36, %c0_13] : memref<40x512xf32, #tpu.memory_space<vmem>>, vector<4x512xf32>
    tpu.vector_store %arg7[%c36, %c0_13], %28 {strides = array<i32>} : memref<40x512xf32, #tpu.memory_space<vmem>>, vector<4x512xf32>,
    %30 = vector.extract_strided_slice %27 {offsets = [0, 495], sizes = [4, 17], strides = [1, 1]} : vector<4x512xf32> to vector<4x17xf32>
    %31 = vector.extract_strided_slice %27 {offsets = [0, 0], sizes = [4, 495], strides = [1, 1]} : vector<4x512xf32> to vector<4x495xf32>
    %32 = tpu.concatenate %30, %31 in 1 : vector<4x17xf32>, vector<4x495xf32> -> vector<4x512xf32>
    %c0_14 = arith.constant 0 : index
    %c0_15 = arith.constant 0 : index
    %33 = vector.load %arg5[%c0_14, %c0_15] : memref<9x512xf32, #tpu.memory_space<vmem>>, vector<1x512xf32>
    %34 = vector.broadcast %33 : vector<1x512xf32> to vector<4x512xf32>
    %35 = arith.mulf %32, %34 : vector<4x512xf32>
    %c0_16 = arith.constant 0 : index
    %c0_17 = arith.constant 0 : index
    %36 = vector.load %arg7[%c0_16, %c0_17] : memref<40x512xf32, #tpu.memory_space<vmem>>, vector<4x512xf32>
    tpu.vector_store %arg7[%c0_16, %c0_17], %35 {strides = array<i32>} : memref<40x512xf32, #tpu.memory_space<vmem>>, vector<4x512xf32>,
    %37 = vector.extract_strided_slice %27 {offsets = [0, 496], sizes = [4, 16], strides = [1, 1]} : vector<4x512xf32> to vector<4x16xf32>
    %38 = vector.extract_strided_slice %27 {offsets = [0, 0], sizes = [4, 496], strides = [1, 1]} : vector<4x512xf32> to vector<4x496xf32>
    %39 = tpu.concatenate %37, %38 in 1 : vector<4x16xf32>, vector<4x496xf32> -> vector<4x512xf32>
    %c1 = arith.constant 1 : index
    %c0_18 = arith.constant 0 : index
    %40 = vector.load %arg5[%c1, %c0_18] : memref<9x512xf32, #tpu.memory_space<vmem>>, vector<1x512xf32>
    %41 = vector.broadcast %40 : vector<1x512xf32> to vector<4x512xf32>
    %42 = arith.mulf %39, %41 : vector<4x512xf32>
    %c4_19 = arith.constant 4 : index
    %c0_20 = arith.constant 0 : index
    %43 = vector.load %arg7[%c4_19, %c0_20] : memref<40x512xf32, #tpu.memory_space<vmem>>, vector<4x512xf32>
    tpu.vector_store %arg7[%c4_19, %c0_20], %42 {strides = array<i32>} : memref<40x512xf32, #tpu.memory_space<vmem>>, vector<4x512xf32>,
    %44 = vector.extract_strided_slice %27 {offsets = [0, 497], sizes = [4, 15], strides = [1, 1]} : vector<4x512xf32> to vector<4x15xf32>
    %45 = vector.extract_strided_slice %27 {offsets = [0, 0], sizes = [4, 497], strides = [1, 1]} : vector<4x512xf32> to vector<4x497xf32>
    %46 = tpu.concatenate %44, %45 in 1 : vector<4x15xf32>, vector<4x497xf32> -> vector<4x512xf32>
    %c2 = arith.constant 2 : index
    %c0_21 = arith.constant 0 : index
    %47 = vector.load %arg5[%c2, %c0_21] : memref<9x512xf32, #tpu.memory_space<vmem>>, vector<1x512xf32>
    %48 = vector.broadcast %47 : vector<1x512xf32> to vector<4x512xf32>
    %49 = arith.mulf %46, %48 : vector<4x512xf32>
    %c8 = arith.constant 8 : index
    %c0_22 = arith.constant 0 : index
    %50 = vector.load %arg7[%c8, %c0_22] : memref<40x512xf32, #tpu.memory_space<vmem>>, vector<4x512xf32>
    tpu.vector_store %arg7[%c8, %c0_22], %49 {strides = array<i32>} : memref<40x512xf32, #tpu.memory_space<vmem>>, vector<4x512xf32>,
    %51 = vector.extract_strided_slice %27 {offsets = [0, 511], sizes = [4, 1], strides = [1, 1]} : vector<4x512xf32> to vector<4x1xf32>
    %52 = vector.extract_strided_slice %27 {offsets = [0, 0], sizes = [4, 511], strides = [1, 1]} : vector<4x512xf32> to vector<4x511xf32>
    %53 = tpu.concatenate %51, %52 in 1 : vector<4x1xf32>, vector<4x511xf32> -> vector<4x512xf32>
    %c3 = arith.constant 3 : index
    %c0_23 = arith.constant 0 : index
    %54 = vector.load %arg5[%c3, %c0_23] : memref<9x512xf32, #tpu.memory_space<vmem>>, vector<1x512xf32>
    %55 = vector.broadcast %54 : vector<1x512xf32> to vector<4x512xf32>
    %56 = arith.mulf %53, %55 : vector<4x512xf32>
    %c12 = arith.constant 12 : index
    %c0_24 = arith.constant 0 : index
    %57 = vector.load %arg7[%c12, %c0_24] : memref<40x512xf32, #tpu.memory_space<vmem>>, vector<4x512xf32>
    tpu.vector_store %arg7[%c12, %c0_24], %56 {strides = array<i32>} : memref<40x512xf32, #tpu.memory_space<vmem>>, vector<4x512xf32>,
    %c4_25 = arith.constant 4 : index
    %c0_26 = arith.constant 0 : index
    %58 = vector.load %arg5[%c4_25, %c0_26] : memref<9x512xf32, #tpu.memory_space<vmem>>, vector<1x512xf32>
    %59 = vector.broadcast %58 : vector<1x512xf32> to vector<4x512xf32>
    %60 = arith.mulf %27, %59 : vector<4x512xf32>
    %c16 = arith.constant 16 : index
    %c0_27 = arith.constant 0 : index
    %61 = vector.load %arg7[%c16, %c0_27] : memref<40x512xf32, #tpu.memory_space<vmem>>, vector<4x512xf32>
    tpu.vector_store %arg7[%c16, %c0_27], %60 {strides = array<i32>} : memref<40x512xf32, #tpu.memory_space<vmem>>, vector<4x512xf32>,
    %62 = vector.extract_strided_slice %27 {offsets = [0, 1], sizes = [4, 511], strides = [1, 1]} : vector<4x512xf32> to vector<4x511xf32>
    %63 = vector.extract_strided_slice %27 {offsets = [0, 0], sizes = [4, 1], strides = [1, 1]} : vector<4x512xf32> to vector<4x1xf32>
    %64 = tpu.concatenate %62, %63 in 1 : vector<4x511xf32>, vector<4x1xf32> -> vector<4x512xf32>
    %c5 = arith.constant 5 : index
    %c0_28 = arith.constant 0 : index
    %65 = vector.load %arg5[%c5, %c0_28] : memref<9x512xf32, #tpu.memory_space<vmem>>, vector<1x512xf32>
    %66 = vector.broadcast %65 : vector<1x512xf32> to vector<4x512xf32>
    %67 = arith.mulf %64, %66 : vector<4x512xf32>
    %c20 = arith.constant 20 : index
    %c0_29 = arith.constant 0 : index
    %68 = vector.load %arg7[%c20, %c0_29] : memref<40x512xf32, #tpu.memory_space<vmem>>, vector<4x512xf32>
    tpu.vector_store %arg7[%c20, %c0_29], %67 {strides = array<i32>} : memref<40x512xf32, #tpu.memory_space<vmem>>, vector<4x512xf32>,
    %69 = vector.extract_strided_slice %27 {offsets = [0, 15], sizes = [4, 497], strides = [1, 1]} : vector<4x512xf32> to vector<4x497xf32>
    %70 = vector.extract_strided_slice %27 {offsets = [0, 0], sizes = [4, 15], strides = [1, 1]} : vector<4x512xf32> to vector<4x15xf32>
    %71 = tpu.concatenate %69, %70 in 1 : vector<4x497xf32>, vector<4x15xf32> -> vector<4x512xf32>
    %c6 = arith.constant 6 : index
    %c0_30 = arith.constant 0 : index
    %72 = vector.load %arg5[%c6, %c0_30] : memref<9x512xf32, #tpu.memory_space<vmem>>, vector<1x512xf32>
    %73 = vector.broadcast %72 : vector<1x512xf32> to vector<4x512xf32>
    %74 = arith.mulf %71, %73 : vector<4x512xf32>
    %c24 = arith.constant 24 : index
    %c0_31 = arith.constant 0 : index
    %75 = vector.load %arg7[%c24, %c0_31] : memref<40x512xf32, #tpu.memory_space<vmem>>, vector<4x512xf32>
    tpu.vector_store %arg7[%c24, %c0_31], %74 {strides = array<i32>} : memref<40x512xf32, #tpu.memory_space<vmem>>, vector<4x512xf32>,
    %76 = vector.extract_strided_slice %27 {offsets = [0, 16], sizes = [4, 496], strides = [1, 1]} : vector<4x512xf32> to vector<4x496xf32>
    %77 = vector.extract_strided_slice %27 {offsets = [0, 0], sizes = [4, 16], strides = [1, 1]} : vector<4x512xf32> to vector<4x16xf32>
    %78 = tpu.concatenate %76, %77 in 1 : vector<4x496xf32>, vector<4x16xf32> -> vector<4x512xf32>
    %c7 = arith.constant 7 : index
    %c0_32 = arith.constant 0 : index
    %79 = vector.load %arg5[%c7, %c0_32] : memref<9x512xf32, #tpu.memory_space<vmem>>, vector<1x512xf32>
    %80 = vector.broadcast %79 : vector<1x512xf32> to vector<4x512xf32>
    %81 = arith.mulf %78, %80 : vector<4x512xf32>
    %c28 = arith.constant 28 : index
    %c0_33 = arith.constant 0 : index
    %82 = vector.load %arg7[%c28, %c0_33] : memref<40x512xf32, #tpu.memory_space<vmem>>, vector<4x512xf32>
    tpu.vector_store %arg7[%c28, %c0_33], %81 {strides = array<i32>} : memref<40x512xf32, #tpu.memory_space<vmem>>, vector<4x512xf32>,
    %83 = vector.extract_strided_slice %27 {offsets = [0, 17], sizes = [4, 495], strides = [1, 1]} : vector<4x512xf32> to vector<4x495xf32>
    %84 = vector.extract_strided_slice %27 {offsets = [0, 0], sizes = [4, 17], strides = [1, 1]} : vector<4x512xf32> to vector<4x17xf32>
    %85 = tpu.concatenate %83, %84 in 1 : vector<4x495xf32>, vector<4x17xf32> -> vector<4x512xf32>
    %c8_34 = arith.constant 8 : index
    %c0_35 = arith.constant 0 : index
    %86 = vector.load %arg5[%c8_34, %c0_35] : memref<9x512xf32, #tpu.memory_space<vmem>>, vector<1x512xf32>
    %87 = vector.broadcast %86 : vector<1x512xf32> to vector<4x512xf32>
    %88 = arith.mulf %85, %87 : vector<4x512xf32>
    %c32 = arith.constant 32 : index
    %c0_36 = arith.constant 0 : index
    %89 = vector.load %arg7[%c32, %c0_36] : memref<40x512xf32, #tpu.memory_space<vmem>>, vector<4x512xf32>
    tpu.vector_store %arg7[%c32, %c0_36], %88 {strides = array<i32>} : memref<40x512xf32, #tpu.memory_space<vmem>>, vector<4x512xf32>,
    %c0_37 = arith.constant 0 : index
    %c0_38 = arith.constant 0 : index
    %90 = vector.load %arg2[%c0_37, %c0_38] : memref<4x40xf32, #tpu.memory_space<vmem>>, vector<4x40xf32>
    %c0_39 = arith.constant 0 : index
    %c0_40 = arith.constant 0 : index
    %91 = vector.load %arg7[%c0_39, %c0_40] : memref<40x512xf32, #tpu.memory_space<vmem>>, vector<40x512xf32>
    %cst_41 = arith.constant dense<0.000000e+00> : vector<4x512xf32>
    %92 = tpu.matmul %90, %91, %cst_41 {dimension_numbers = #tpu.dot_dimension_numbers<[1], [0], [0], [1], [0, 0, 1, 1], [], []>} : vector<4x40xf32>, vector<40x512xf32>, vector<4x512xf32> -> vector<4x512xf32>
    %c8_42 = arith.constant 8 : index
    %c0_43 = arith.constant 0 : index
    %93 = vector.load %arg4[%c8_42, %c0_43] : memref<48x1xf32, #tpu.memory_space<vmem>>, vector<4x1xf32>
    %c12_44 = arith.constant 12 : index
    %c0_45 = arith.constant 0 : index
    %94 = vector.load %arg4[%c12_44, %c0_45] : memref<48x1xf32, #tpu.memory_space<vmem>>, vector<4x1xf32>
    %cst_46 = arith.constant dense<0.000000e+00> : vector<4xf32>
    %95 = vector.multi_reduction <add>, %92, %cst_46 [1] : vector<4x512xf32> to vector<4xf32>
    %96 = vector.shape_cast %95 : vector<4xf32> to vector<4x1xf32>
    %cst_47 = arith.constant 5.120000e+02 : f32
    %97 = vector.broadcast %cst_47 : f32 to vector<4x1xf32>
    %98 = arith.divf %96, %97 : vector<4x1xf32>
    %99 = arith.mulf %92, %92 : vector<4x512xf32>
    %cst_48 = arith.constant dense<0.000000e+00> : vector<4xf32>
    %100 = vector.multi_reduction <add>, %99, %cst_48 [1] : vector<4x512xf32> to vector<4xf32>
    %101 = vector.shape_cast %100 : vector<4xf32> to vector<4x1xf32>
    %cst_49 = arith.constant 5.120000e+02 : f32
    %102 = vector.broadcast %cst_49 : f32 to vector<4x1xf32>
    %103 = arith.divf %101, %102 : vector<4x1xf32>
    %104 = arith.mulf %98, %98 : vector<4x1xf32>
    %105 = arith.subf %103, %104 : vector<4x1xf32>
    %cst_50 = arith.constant 9.99999974E-6 : f32
    %106 = vector.broadcast %cst_50 : f32 to vector<4x1xf32>
    %107 = arith.addf %105, %106 : vector<4x1xf32>
    %108 = math.rsqrt %107 : vector<4x1xf32>
    %109 = arith.mulf %93, %108 : vector<4x1xf32>
    %110 = arith.mulf %98, %109 : vector<4x1xf32>
    %111 = arith.subf %94, %110 : vector<4x1xf32>
    %112 = vector.broadcast %109 : vector<4x1xf32> to vector<4x512xf32>
    %113 = arith.mulf %92, %112 : vector<4x512xf32>
    %114 = vector.broadcast %111 : vector<4x1xf32> to vector<4x512xf32>
    %115 = arith.addf %113, %114 : vector<4x512xf32>
    %cst_51 = arith.constant 0.000000e+00 : f32
    %116 = vector.broadcast %cst_51 : f32 to vector<4x512xf32>
    %117 = arith.maximumf %115, %116 : vector<4x512xf32>
    %c0_52 = arith.constant 0 : index
    %c0_53 = arith.constant 0 : index
    %118 = vector.load %arg3[%c0_52, %c0_53] : memref<16x4xf32, #tpu.memory_space<vmem>>, vector<16x4xf32>
    %cst_54 = arith.constant dense<0.000000e+00> : vector<16x512xf32>
    %119 = tpu.matmul %118, %117, %cst_54 {dimension_numbers = #tpu.dot_dimension_numbers<[1], [0], [0], [1], [0, 0, 1, 1], [], []>} : vector<16x4xf32>, vector<4x512xf32>, vector<16x512xf32> -> vector<16x512xf32>
    %c16_55 = arith.constant 16 : index
    %c0_56 = arith.constant 0 : index
    %120 = vector.load %arg4[%c16_55, %c0_56] : memref<48x1xf32, #tpu.memory_space<vmem>>, vector<16x1xf32>
    %c32_57 = arith.constant 32 : index
    %c0_58 = arith.constant 0 : index
    %121 = vector.load %arg4[%c32_57, %c0_58] : memref<48x1xf32, #tpu.memory_space<vmem>>, vector<16x1xf32>
    %cst_59 = arith.constant dense<0.000000e+00> : vector<16xf32>
    %122 = vector.multi_reduction <add>, %119, %cst_59 [1] : vector<16x512xf32> to vector<16xf32>
    %123 = vector.shape_cast %122 : vector<16xf32> to vector<16x1xf32>
    %cst_60 = arith.constant 5.120000e+02 : f32
    %124 = vector.broadcast %cst_60 : f32 to vector<16x1xf32>
    %125 = arith.divf %123, %124 : vector<16x1xf32>
    %126 = arith.mulf %119, %119 : vector<16x512xf32>
    %cst_61 = arith.constant dense<0.000000e+00> : vector<16xf32>
    %127 = vector.multi_reduction <add>, %126, %cst_61 [1] : vector<16x512xf32> to vector<16xf32>
    %128 = vector.shape_cast %127 : vector<16xf32> to vector<16x1xf32>
    %cst_62 = arith.constant 5.120000e+02 : f32
    %129 = vector.broadcast %cst_62 : f32 to vector<16x1xf32>
    %130 = arith.divf %128, %129 : vector<16x1xf32>
    %131 = arith.mulf %125, %125 : vector<16x1xf32>
    %132 = arith.subf %130, %131 : vector<16x1xf32>
    %cst_63 = arith.constant 9.99999974E-6 : f32
    %133 = vector.broadcast %cst_63 : f32 to vector<16x1xf32>
    %134 = arith.addf %132, %133 : vector<16x1xf32>
    %135 = math.rsqrt %134 : vector<16x1xf32>
    %136 = arith.mulf %120, %135 : vector<16x1xf32>
    %137 = arith.mulf %125, %136 : vector<16x1xf32>
    %138 = arith.subf %121, %137 : vector<16x1xf32>
    %139 = vector.broadcast %136 : vector<16x1xf32> to vector<16x512xf32>
    %140 = arith.mulf %119, %139 : vector<16x512xf32>
    %141 = vector.broadcast %138 : vector<16x1xf32> to vector<16x512xf32>
    %142 = arith.addf %140, %141 : vector<16x512xf32>
    %143 = arith.addf %142, %0 : vector<16x512xf32>
    %cst_64 = arith.constant 0.000000e+00 : f32
    %144 = vector.broadcast %cst_64 : f32 to vector<16x512xf32>
    %145 = arith.maximumf %143, %144 : vector<16x512xf32>
    %c0_65 = arith.constant 0 : index
    %c0_66 = arith.constant 0 : index
    %146 = vector.load %arg6[%c0_65, %c0_66] : memref<16x512xf32, #tpu.memory_space<vmem>>, vector<16x512xf32>
    tpu.vector_store %arg6[%c0_65, %c0_66], %145 {strides = array<i32>} : memref<16x512xf32, #tpu.memory_space<vmem>>, vector<16x512xf32>,
    return
  }
}

</mosaic_0001>

<llo_original>
// kernel: debottleneck_pallas.1
$region0: #{debottleneck_pallas.1}
  #allocation0 [shape = 'u32[]', space=smem, size = 0x4, offset = 0x4, fixed_abs, tag = 'smem constant byte address 0x4 - core index']
  #allocation1 [shape = 'u32[144,128]{1,0:T(1,128)}', space=vmem, size = 0x12000, scoped, tag = 'internal scratch']
  #allocation2 [shape = 'f32[40,512]{1,0:T(8,128)}', space=vmem, size = 0x14000, scoped, tag = 'scratch operand']
  %s0 = inlined_call_operand.vmem [shape: f32[16,512], index: 0, kind: input, shape index: {}]
  %s1 = inlined_call_operand.vmem [shape: f32[4,16], index: 1, kind: input, shape index: {}]
  %s2 = inlined_call_operand.vmem [shape: f32[4,40], index: 2, kind: input, shape index: {}]
  %s3 = inlined_call_operand.vmem [shape: f32[16,4], index: 3, kind: input, shape index: {}]
  %s4 = inlined_call_operand.vmem [shape: f32[48,1], index: 4, kind: input, shape index: {}]
  %s5 = inlined_call_operand.vmem [shape: f32[9,512], index: 5, kind: input, shape index: {}]
  %s6 = inlined_call_operand.vmem [shape: f32[16,512], index: 6, kind: output, shape index: {}]
  %s7 = sld [smem:[#allocation0]]
  $region34: #{debottleneck_pallas.1} parent=0
    _
  %s9 = ssub.s32 1, %s7
  %s10 = scalar_select 0, %s9, %s7
  // Predicated region
  $region2: #{debottleneck_pallas.1} parent=0 // pred_check
    _
  $region3: #{debottleneck_pallas.1} parent=0 // pred_check_branch
    %12 = sbr.rel (0) target = $region5
  $region4: #{debottleneck_pallas.1} parent=0 // pred_region
    _
  $region5: #{debottleneck_pallas.1} parent=0 // pred_fallthru
    _
  // Predicated region
  $region6: #{debottleneck_pallas.1} parent=0 // pred_check
    _
  $region7: #{debottleneck_pallas.1} parent=0 // pred_check_branch
    %14 = sbr.rel (0) target = $region9
  $region8: #{debottleneck_pallas.1} parent=0 // pred_region
    _
  $region9: #{debottleneck_pallas.1} parent=0 // pred_fallthru
    _
  // Predicated region
  $region10: #{debottleneck_pallas.1} parent=0 // pred_check
    _
  $region11: #{debottleneck_pallas.1} parent=0 // pred_check_branch
    %16 = sbr.rel (0) target = $region13
  $region12: #{debottleneck_pallas.1} parent=0 // pred_region
    _
  $region13: #{debottleneck_pallas.1} parent=0 // pred_fallthru
    _
  // Predicated region
  $region14: #{debottleneck_pallas.1} parent=0 // pred_check
    _
  $region15: #{debottleneck_pallas.1} parent=0 // pred_check_branch
    %18 = sbr.rel (0) target = $region17
  $region16: #{debottleneck_pallas.1} parent=0 // pred_region
    _
  $region17: #{debottleneck_pallas.1} parent=0 // pred_fallthru
    _
  // Predicated region
  $region18: #{debottleneck_pallas.1} parent=0 // pred_check
    _
  $region19: #{debottleneck_pallas.1} parent=0 // pred_check_branch
    %20 = sbr.rel (0) target = $region21
  $region20: #{debottleneck_pallas.1} parent=0 // pred_region
    _
  $region21: #{debottleneck_pallas.1} parent=0 // pred_fallthru
    _
  // Predicated region
  $region22: #{debottleneck_pallas.1} parent=0 // pred_check
    _
  $region23: #{debottleneck_pallas.1} parent=0 // pred_check_branch
    %22 = sbr.rel (0) target = $region25
  $region24: #{debottleneck_pallas.1} parent=0 // pred_region
    _
  $region25: #{debottleneck_pallas.1} parent=0 // pred_fallthru
    _
  %v23 = vld [vmem:[%s0] sm:$0xff]
  %v24 = vld [vmem:[%s0 + $0x8] sm:$0xff]
  %v25 = vld [vmem:[%s0 + $0x10] sm:$0xff]
  %v26 = vld [vmem:[%s0 + $0x18] sm:$0xff]
  %v27 = vld [vmem:[%s0 + $0x20] sm:$0xff]
  %v28 = vld [vmem:[%s0 + $0x28] sm:$0xff]
  %v29 = vld [vmem:[%s0 + $0x30] sm:$0xff]
  %v30 = vld [vmem:[%s0 + $0x38] sm:$0xff]
  %v31 = vld [vmem:[%s1] sm:$0xf]
  %vm32 = vcmask 130048
  %v34 = vsel %vm32, %v31, 0
  %36 = vmatprep.subr.mxu0 %v24
  %37 = vmatpush1.msra.mxu0 %v23
  %38 = vmatprep.subr.mxu0 %v28
  %39 = vmatpush1.msra.mxu0 %v27
  %40 = vmatprep.subr.mxu0 0.0
  %41 = vmatpush1.msra.mxu0 0.0
  %42 = vmatprep.subr.mxu0 0.0
  %43 = vmatpush1.msra.mxu0 0.0
  %44 = vmatprep.subr.mxu0 0.0
  %45 = vmatpush1.msra.mxu0 0.0
  %46 = vmatprep.subr.mxu0 0.0
  %47 = vmatpush1.msra.mxu0 0.0
  %48 = vmatprep.subr.mxu0 0.0
  %49 = vmatpush1.msra.mxu0 0.0
  %50 = vmatprep.subr.mxu0 0.0
  %51 = vmatpush1.msra.mxu0 0.0
  %52 = vmatprep.subr.mxu0 0.0
  %53 = vmatpush1.msra.mxu0 0.0
  %54 = vmatprep.subr.mxu0 0.0
  %55 = vmatpush1.msra.mxu0 0.0
  %56 = vmatprep.subr.mxu0 0.0
  %57 = vmatpush1.msra.mxu0 0.0
  %58 = vmatprep.subr.mxu0 0.0
  %59 = vmatpush1.msra.mxu0 0.0
  %60 = vmatprep.subr.mxu0 0.0
  %61 = vmatpush1.msra.mxu0 0.0
  %62 = vmatprep.subr.mxu0 0.0
  %63 = vmatpush1.msra.mxu0 0.0
  %64 = vmatprep.subr.mxu0 0.0
  %65 = vmatpush1.msra.mxu0 0.0
  %66 = vmatprep.subr.mxu0 0.0
  %67 = vmatpush1.msra.mxu0 0.0
  %68 = vmatprep.subr.mxu0 0.0
  %69 = vmatpush1.msra.mxu0 0.0
  %70 = vmatprep.subr.mxu0 0.0
  %71 = vmatpush1.msra.mxu0 0.0
  %72 = vmatprep.subr.mxu0 0.0
  %73 = vmatpush1.msra.mxu0 0.0
  %74 = vmatprep.subr.mxu0 0.0
  %75 = vmatpush1.msra.mxu0 0.0
  %76 = vmatprep.subr.mxu0 0.0
  %77 = vmatpush1.msra.mxu0 0.0
  %78 = vmatprep.subr.mxu0 0.0
  %79 = vmatpush1.msra.mxu0 0.0
  %80 = vmatprep.subr.mxu0 0.0
  %81 = vmatpush1.msra.mxu0 0.0
  %82 = vmatprep.subr.mxu0 0.0
  %83 = vmatpush1.msra.mxu0 0.0
  %84 = vmatprep.subr.mxu0 0.0
  %85 = vmatpush1.msra.mxu0 0.0
  %86 = vmatprep.subr.mxu0 0.0
  %87 = vmatpush1.msra.mxu0 0.0
  %88 = vmatprep.subr.mxu0 0.0
  %89 = vmatpush1.msra.mxu0 0.0
  %90 = vmatprep.subr.mxu0 0.0
  %91 = vmatpush1.msra.mxu0 0.0
  %92 = vmatprep.subr.mxu0 0.0
  %93 = vmatpush1.msra.mxu0 0.0
  %94 = vmatprep.subr.mxu0 0.0
  %95 = vmatpush1.msra.mxu0 0.0
  %96 = vmatprep.subr.mxu0 0.0
  %97 = vmatpush1.msra.mxu0 0.0
  %98 = vmatprep.subr.mxu0 0.0
  %99 = vmatpush1.msra.mxu0 0.0
  %100 = vmatprep.mubr.f32.mxu0 0.0
  %101 = vmatmul.mubr.f32.gmra.mrb[0].mxu0 %v34
  %v102 = vpop.f32.mrb[0].mxu0
  %v103 = vadd.f32 0.0, %v102
  %v104 = vpop.f32.mrb[0].mxu0
  %v105 = vadd.f32 0.0, %v104
  %106 = vdwg.mxu0
  %107 = vmatprep.subr.mxu0 %v26
  %108 = vmatpush1.msra.mxu0 %v25
  %109 = vmatprep.subr.mxu0 %v30
  %110 = vmatpush1.msra.mxu0 %v29
  %111 = vmatprep.subr.mxu0 0.0
  %112 = vmatpush1.msra.mxu0 0.0
  %113 = vmatprep.subr.mxu0 0.0
  %114 = vmatpush1.msra.mxu0 0.0
  %115 = vmatprep.subr.mxu0 0.0
  %116 = vmatpush1.msra.mxu0 0.0
  %117 = vmatprep.subr.mxu0 0.0
  %118 = vmatpush1.msra.mxu0 0.0
  %119 = vmatprep.subr.mxu0 0.0
  %120 = vmatpush1.msra.mxu0 0.0
  %121 = vmatprep.subr.mxu0 0.0
  %122 = vmatpush1.msra.mxu0 0.0
  %123 = vmatprep.subr.mxu0 0.0
  %124 = vmatpush1.msra.mxu0 0.0
  %125 = vmatprep.subr.mxu0 0.0
  %126 = vmatpush1.msra.mxu0 0.0
  %127 = vmatprep.subr.mxu0 0.0
  %128 = vmatpush1.msra.mxu0 0.0
  %129 = vmatprep.subr.mxu0 0.0
  %130 = vmatpush1.msra.mxu0 0.0
  %131 = vmatprep.subr.mxu0 0.0
  %132 = vmatpush1.msra.mxu0 0.0
  %133 = vmatprep.subr.mxu0 0.0
  %134 = vmatpush1.msra.mxu0 0.0
  %135 = vmatprep.subr.mxu0 0.0
  %136 = vmatpush1.msra.mxu0 0.0
  %137 = vmatprep.subr.mxu0 0.0
  %138 = vmatpush1.msra.mxu0 0.0
  %139 = vmatprep.subr.mxu0 0.0
  %140 = vmatpush1.msra.mxu0 0.0
  %141 = vmatprep.subr.mxu0 0.0
  %142 = vmatpush1.msra.mxu0 0.0
  %143 = vmatprep.subr.mxu0 0.0
  %144 = vmatpush1.msra.mxu0 0.0
  %145 = vmatprep.subr.mxu0 0.0
  %146 = vmatpush1.msra.mxu0 0.0
  %147 = vmatprep.subr.mxu0 0.0
  %148 = vmatpush1.msra.mxu0 0.0
  %149 = vmatprep.subr.mxu0 0.0
  %150 = vmatpush1.msra.mxu0 0.0
  %151 = vmatprep.subr.mxu0 0.0
  %152 = vmatpush1.msra.mxu0 0.0
  %153 = vmatprep.subr.mxu0 0.0
  %154 = vmatpush1.msra.mxu0 0.0
  %155 = vmatprep.subr.mxu0 0.0
  %156 = vmatpush1.msra.mxu0 0.0
  %157 = vmatprep.subr.mxu0 0.0
  %158 = vmatpush1.msra.mxu0 0.0
  %159 = vmatprep.subr.mxu0 0.0
  %160 = vmatpush1.msra.mxu0 0.0
  %161 = vmatprep.subr.mxu0 0.0
  %162 = vmatpush1.msra.mxu0 0.0
  %163 = vmatprep.subr.mxu0 0.0
  %164 = vmatpush1.msra.mxu0 0.0
  %165 = vmatprep.subr.mxu0 0.0
  %166 = vmatpush1.msra.mxu0 0.0
  %167 = vmatprep.subr.mxu0 0.0
  %168 = vmatpush1.msra.mxu0 0.0
  %169 = vmatprep.subr.mxu0 0.0
  %170 = vmatpush1.msra.mxu0 0.0
  %171 = vmatprep.mubr.f32.mxu0 0.0
  %172 = vmatmul.mubr.f32.gmra.mrb[0].mxu0 %v34
  %v173 = vpop.f32.mrb[0].mxu0
  %v174 = vadd.f32 0.0, %v173
  %v175 = vpop.f32.mrb[0].mxu0
  %v176 = vadd.f32 0.0, %v175
  %177 = vdwg.mxu0
  %v178 = vld [vmem:[%s4] sm:$0xf]
  %v179 = vld [vmem:[%s4 + $0x4] sm:$0xf]
  %vm180 = vcmask 1043456
  %v181 = vsel %vm180, %v103, 0.0
  %v182 = vsel %vm180, %v105, 0.0
  %v183 = vadd.f32 %v181, %v182
  %v184 = vsel %vm180, %v174, 0.0
  %v185 = vadd.f32 %v183, %v184
  %v186 = vsel %vm180, %v176, 0.0
  %v187 = vadd.f32 %v185, %v186
  %188 = vadd.xlane.f32.xlu0 %v187
  %v189 = vpop.xlane.xlu0 %188
  %v190 = vrcp.pop 512.0
  %v191 = vmul.f32 %v189, %v190
  %v192 = vmul.f32 %v103, %v103
  %v193 = vmul.f32 %v105, %v105
  %v194 = vmul.f32 %v174, %v174
  %v195 = vmul.f32 %v176, %v176
  %v196 = vsel %vm180, %v192, 0.0
  %v197 = vsel %vm180, %v193, 0.0
  %v198 = vadd.f32 %v196, %v197
  %v199 = vsel %vm180, %v194, 0.0
  %v200 = vadd.f32 %v198, %v199
  %v201 = vsel %vm180, %v195, 0.0
  %v202 = vadd.f32 %v200, %v201
  %203 = vadd.xlane.f32.xlu0 %v202
  %v204 = vpop.xlane.xlu0 %203
  %v205 = vmul.f32 %v204, %v190
  %v206 = vmul.f32 %v191, %v191
  %v207 = vsub.f32 %v205, %v206
  %v208 = vadd.f32 %v207, 1e-05
  %v209 = vrsqrt.pop %v208
  %v210 = vmul.f32 %v178, %v209
  %v211 = vmul.f32 %v191, %v210
  %v212 = vsub.f32 %v179, %v211
  %214 = vset.pattern.permute.xlu0 0
  %215 = vperm.xlu0 %214, %v210
  %v216 = vpop.permute.xlu0 %215
  %v218 = vmul.f32 %v103, %v216
  %v219 = vmul.f32 %v105, %v216
  %v220 = vmul.f32 %v174, %v216
  %v221 = vmul.f32 %v176, %v216
  %223 = vset.pattern.permute.xlu0 0
  %224 = vperm.xlu0 %223, %v212
  %v225 = vpop.permute.xlu0 %224
  %v227 = vadd.f32 %v218, %v225
  %v228 = vadd.f32 %v219, %v225
  %v229 = vadd.f32 %v220, %v225
  %v230 = vadd.f32 %v221, %v225
  %v231 = vmax.f32 %v227, 0.0
  %v232 = vmax.f32 %v228, 0.0
  %v233 = vmax.f32 %v229, 0.0
  %v234 = vmax.f32 %v230, 0.0
  %235 = vst [vmem:[#allocation2 + $0x80] sm:$0xf0] 0.0
  %236 = vst [vmem:[#allocation2 + $0x88] sm:$0xf0] 0.0
  %237 = vst [vmem:[#allocation2 + $0x90] sm:$0xf0] 0.0
  %238 = vst [vmem:[#allocation2 + $0x98] sm:$0xf0] 0.0
  %240 = vrot.lane.b32.xlu0 %v234, 17
  %v241 = vpop.permute.xlu0 %240
  %246 = vrot.lane.b32.xlu0 %v231, 17
  %v247 = vpop.permute.xlu0 %246
  %248 = vrot.lane.b32.xlu0 %v232, 17
  %v249 = vpop.permute.xlu0 %248
  %250 = vrot.lane.b32.xlu0 %v233, 17
  %v251 = vpop.permute.xlu0 %250
  %vm252 = vcmask 138240
  %v253 = vsel %vm252, %v247, %v249
  %v254 = vsel %vm252, %v249, %v251
  %v255 = vsel %vm252, %v251, %v241
  %v260 = vsel %vm252, %v241, %v247
  %v261 = vld [vmem:[%s5] ss:$8 sm:$0xf]
  %v263 = vlaneseq
  %v264 = vshrl.u32 %v263, 7
  %v265 = vsub.s32 0, %v264
  %v266 = vrot.slane %v261, %v265
  %v267 = vlaneseq
  %v268 = vshrl.u32 %v267, 7
  %v269 = vsub.s32 1, %v268
  %v270 = vrot.slane %v261, %v269
  %v271 = vlaneseq
  %v272 = vshrl.u32 %v271, 7
  %v273 = vsub.s32 2, %v272
  %v274 = vrot.slane %v261, %v273
  %v275 = vlaneseq
  %v276 = vshrl.u32 %v275, 7
  %v277 = vsub.s32 3, %v276
  %v278 = vrot.slane %v261, %v277
  %v283 = vmul.f32 %v260, %v266
  %v284 = vmul.f32 %v253, %v270
  %v285 = vmul.f32 %v254, %v274
  %v286 = vmul.f32 %v255, %v278
  %287 = vst [vmem:[#allocation2] sm:$0xf] %v283
  %288 = vst [vmem:[#allocation2 + $0x8] sm:$0xf] %v284
  %289 = vst [vmem:[#allocation2 + $0x10] sm:$0xf] %v285
  %290 = vst [vmem:[#allocation2 + $0x18] sm:$0xf] %v286
  %291 = vrot.lane.b32.xlu0 %v234, 16
  %v292 = vpop.permute.xlu0 %291
  %294 = vrot.lane.b32.xlu0 %v231, 16
  %v295 = vpop.permute.xlu0 %294
  %296 = vrot.lane.b32.xlu0 %v232, 16
  %v297 = vpop.permute.xlu0 %296
  %298 = vrot.lane.b32.xlu0 %v233, 16
  %v299 = vpop.permute.xlu0 %298
  %v300 = vsel %vm32, %v295, %v297
  %v301 = vsel %vm32, %v297, %v299
  %v302 = vsel %vm32, %v299, %v292
  %v307 = vsel %vm32, %v292, %v295
  %s308 = scalar_lea.vmem %s5, 1
  %v309 = vld [vmem:[%s308] ss:$8 sm:$0xf]
  %v311 = vlaneseq
  %v312 = vshrl.u32 %v311, 7
  %v313 = vsub.s32 0, %v312
  %v314 = vrot.slane %v309, %v313
  %v315 = vlaneseq
  %v316 = vshrl.u32 %v315, 7
  %v317 = vsub.s32 1, %v316
  %v318 = vrot.slane %v309, %v317
  %v319 = vlaneseq
  %v320 = vshrl.u32 %v319, 7
  %v321 = vsub.s32 2, %v320
  %v322 = vrot.slane %v309, %v321
  %v323 = vlaneseq
  %v324 = vshrl.u32 %v323, 7
  %v325 = vsub.s32 3, %v324
  %v326 = vrot.slane %v309, %v325
  %v331 = vmul.f32 %v307, %v314
  %v332 = vmul.f32 %v300, %v318
  %v333 = vmul.f32 %v301, %v322
  %v334 = vmul.f32 %v302, %v326
  %v339 = vrot.slane %v331, 4
  %v340 = vrot.slane %v332, 4
  %v341 = vrot.slane %v333, 4
  %v342 = vrot.slane %v334, 4
  %347 = vst [vmem:[#allocation2] sm:$0xf0] %v339
  %348 = vst [vmem:[#allocation2 + $0x8] sm:$0xf0] %v340
  %349 = vst [vmem:[#allocation2 + $0x10] sm:$0xf0] %v341
  %350 = vst [vmem:[#allocation2 + $0x18] sm:$0xf0] %v342
  %351 = vrot.lane.b32.xlu0 %v234, 15
  %v352 = vpop.permute.xlu0 %351
  %354 = vrot.lane.b32.xlu0 %v231, 15
  %v355 = vpop.permute.xlu0 %354
  %356 = vrot.lane.b32.xlu0 %v232, 15
  %v357 = vpop.permute.xlu0 %356
  %358 = vrot.lane.b32.xlu0 %v233, 15
  %v359 = vpop.permute.xlu0 %358
  %vm360 = vcmask 121856
  %v361 = vsel %vm360, %v355, %v357
  %v362 = vsel %vm360, %v357, %v359
  %v363 = vsel %vm360, %v359, %v352
  %v368 = vsel %vm360, %v352, %v355
  %s369 = scalar_lea.vmem %s5, 2
  %v370 = vld [vmem:[%s369] ss:$8 sm:$0xf]
  %v372 = vlaneseq
  %v373 = vshrl.u32 %v372, 7
  %v374 = vsub.s32 0, %v373
  %v375 = vrot.slane %v370, %v374
  %v376 = vlaneseq
  %v377 = vshrl.u32 %v376, 7
  %v378 = vsub.s32 1, %v377
  %v379 = vrot.slane %v370, %v378
  %v380 = vlaneseq
  %v381 = vshrl.u32 %v380, 7
  %v382 = vsub.s32 2, %v381
  %v383 = vrot.slane %v370, %v382
  %v384 = vlaneseq
  %v385 = vshrl.u32 %v384, 7
  %v386 = vsub.s32 3, %v385
  %v387 = vrot.slane %v370, %v386
  %v392 = vmul.f32 %v368, %v375
  %v393 = vmul.f32 %v361, %v379
  %v394 = vmul.f32 %v362, %v383
  %v395 = vmul.f32 %v363, %v387
  %396 = vst [vmem:[#allocation2 + $0x20] sm:$0xf] %v392
  %397 = vst [vmem:[#allocation2 + $0x28] sm:$0xf] %v393
  %398 = vst [vmem:[#allocation2 + $0x30] sm:$0xf] %v394
  %399 = vst [vmem:[#allocation2 + $0x38] sm:$0xf] %v395
  %400 = vrot.lane.b32.xlu0 %v234, 1
  %v401 = vpop.permute.xlu0 %400
  %403 = vrot.lane.b32.xlu0 %v231, 1
  %v404 = vpop.permute.xlu0 %403
  %405 = vrot.lane.b32.xlu0 %v232, 1
  %v406 = vpop.permute.xlu0 %405
  %407 = vrot.lane.b32.xlu0 %v233, 1
  %v408 = vpop.permute.xlu0 %407
  %vm409 = vcmask 7168
  %v410 = vsel %vm409, %v404, %v406
  %v411 = vsel %vm409, %v406, %v408
  %v412 = vsel %vm409, %v408, %v401
  %v417 = vsel %vm409, %v401, %v404
  %s418 = scalar_lea.vmem %s5, 3
  %v419 = vld [vmem:[%s418] ss:$8 sm:$0xf]
  %v421 = vlaneseq
  %v422 = vshrl.u32 %v421, 7
  %v423 = vsub.s32 0, %v422
  %v424 = vrot.slane %v419, %v423
  %v425 = vlaneseq
  %v426 = vshrl.u32 %v425, 7
  %v427 = vsub.s32 1, %v426
  %v428 = vrot.slane %v419, %v427
  %v429 = vlaneseq
  %v430 = vshrl.u32 %v429, 7
  %v431 = vsub.s32 2, %v430
  %v432 = vrot.slane %v419, %v431
  %v433 = vlaneseq
  %v434 = vshrl.u32 %v433, 7
  %v435 = vsub.s32 3, %v434
  %v436 = vrot.slane %v419, %v435
  %v441 = vmul.f32 %v417, %v424
  %v442 = vmul.f32 %v410, %v428
  %v443 = vmul.f32 %v411, %v432
  %v444 = vmul.f32 %v412, %v436
  %v449 = vrot.slane %v441, 4
  %v450 = vrot.slane %v442, 4
  %v451 = vrot.slane %v443, 4
  %v452 = vrot.slane %v444, 4
  %457 = vst [vmem:[#allocation2 + $0x20] sm:$0xf0] %v449
  %458 = vst [vmem:[#allocation2 + $0x28] sm:$0xf0] %v450
  %459 = vst [vmem:[#allocation2 + $0x30] sm:$0xf0] %v451
  %460 = vst [vmem:[#allocation2 + $0x38] sm:$0xf0] %v452
  %s461 = scalar_lea.vmem %s5, 4
  %v462 = vld [vmem:[%s461] ss:$8 sm:$0xf]
  %v464 = vlaneseq
  %v465 = vshrl.u32 %v464, 7
  %v466 = vsub.s32 0, %v465
  %v467 = vrot.slane %v462, %v466
  %v468 = vlaneseq
  %v469 = vshrl.u32 %v468, 7
  %v470 = vsub.s32 1, %v469
  %v471 = vrot.slane %v462, %v470
  %v472 = vlaneseq
  %v473 = vshrl.u32 %v472, 7
  %v474 = vsub.s32 2, %v473
  %v475 = vrot.slane %v462, %v474
  %v476 = vlaneseq
  %v477 = vshrl.u32 %v476, 7
  %v478 = vsub.s32 3, %v477
  %v479 = vrot.slane %v462, %v478
  %v484 = vmul.f32 %v231, %v467
  %v485 = vmul.f32 %v232, %v471
  %v486 = vmul.f32 %v233, %v475
  %v487 = vmul.f32 %v234, %v479
  %488 = vst [vmem:[#allocation2 + $0x40] sm:$0xf] %v484
  %489 = vst [vmem:[#allocation2 + $0x48] sm:$0xf] %v485
  %490 = vst [vmem:[#allocation2 + $0x50] sm:$0xf] %v486
  %491 = vst [vmem:[#allocation2 + $0x58] sm:$0xf] %v487
  %492 = vrot.lane.b32.xlu0 %v231, 127
  %v493 = vpop.permute.xlu0 %492
  %494 = vrot.lane.b32.xlu0 %v232, 127
  %v495 = vpop.permute.xlu0 %494
  %496 = vrot.lane.b32.xlu0 %v233, 127
  %v497 = vpop.permute.xlu0 %496
  %498 = vrot.lane.b32.xlu0 %v234, 127
  %v499 = vpop.permute.xlu0 %498
  %vm500 = vcmask 1039360
  %v501 = vsel %vm500, %v493, %v495
  %v502 = vsel %vm500, %v495, %v497
  %v503 = vsel %vm500, %v497, %v499
  %v509 = vsel %vm500, %v499, %v493
  %s510 = scalar_lea.vmem %s5, 5
  %v511 = vld [vmem:[%s510] ss:$8 sm:$0xf]
  %v513 = vlaneseq
  %v514 = vshrl.u32 %v513, 7
  %v515 = vsub.s32 0, %v514
  %v516 = vrot.slane %v511, %v515
  %v517 = vlaneseq
  %v518 = vshrl.u32 %v517, 7
  %v519 = vsub.s32 1, %v518
  %v520 = vrot.slane %v511, %v519
  %v521 = vlaneseq
  %v522 = vshrl.u32 %v521, 7
  %v523 = vsub.s32 2, %v522
  %v524 = vrot.slane %v511, %v523
  %v525 = vlaneseq
  %v526 = vshrl.u32 %v525, 7
  %v527 = vsub.s32 3, %v526
  %v528 = vrot.slane %v511, %v527
  %v533 = vmul.f32 %v501, %v516
  %v534 = vmul.f32 %v502, %v520
  %v535 = vmul.f32 %v503, %v524
  %v536 = vmul.f32 %v509, %v528
  %v541 = vrot.slane %v533, 4
  %v542 = vrot.slane %v534, 4
  %v543 = vrot.slane %v535, 4
  %v544 = vrot.slane %v536, 4
  %549 = vst [vmem:[#allocation2 + $0x40] sm:$0xf0] %v541
  %550 = vst [vmem:[#allocation2 + $0x48] sm:$0xf0] %v542
  %551 = vst [vmem:[#allocation2 + $0x50] sm:$0xf0] %v543
  %552 = vst [vmem:[#allocation2 + $0x58] sm:$0xf0] %v544
  %553 = vrot.lane.b32.xlu0 %v231, 113
  %v554 = vpop.permute.xlu0 %553
  %555 = vrot.lane.b32.xlu0 %v232, 113
  %v556 = vpop.permute.xlu0 %555
  %557 = vrot.lane.b32.xlu0 %v233, 113
  %v558 = vpop.permute.xlu0 %557
  %559 = vrot.lane.b32.xlu0 %v234, 113
  %v560 = vpop.permute.xlu0 %559
  %vm561 = vcmask 924672
  %v562 = vsel %vm561, %v554, %v556
  %v563 = vsel %vm561, %v556, %v558
  %v564 = vsel %vm561, %v558, %v560
  %v570 = vsel %vm561, %v560, %v554
  %s571 = scalar_lea.vmem %s5, 6
  %v572 = vld [vmem:[%s571] ss:$8 sm:$0xf]
  %v574 = vlaneseq
  %v575 = vshrl.u32 %v574, 7
  %v576 = vsub.s32 0, %v575
  %v577 = vrot.slane %v572, %v576
  %v578 = vlaneseq
  %v579 = vshrl.u32 %v578, 7
  %v580 = vsub.s32 1, %v579
  %v581 = vrot.slane %v572, %v580
  %v582 = vlaneseq
  %v583 = vshrl.u32 %v582, 7
  %v584 = vsub.s32 2, %v583
  %v585 = vrot.slane %v572, %v584
  %v586 = vlaneseq
  %v587 = vshrl.u32 %v586, 7
  %v588 = vsub.s32 3, %v587
  %v589 = vrot.slane %v572, %v588
  %v594 = vmul.f32 %v562, %v577
  %v595 = vmul.f32 %v563, %v581
  %v596 = vmul.f32 %v564, %v585
  %v597 = vmul.f32 %v570, %v589
  %598 = vst [vmem:[#allocation2 + $0x60] sm:$0xf] %v594
  %599 = vst [vmem:[#allocation2 + $0x68] sm:$0xf] %v595
  %600 = vst [vmem:[#allocation2 + $0x70] sm:$0xf] %v596
  %601 = vst [vmem:[#allocation2 + $0x78] sm:$0xf] %v597
  %602 = vrot.lane.b32.xlu0 %v231, 112
  %v603 = vpop.permute.xlu0 %602
  %604 = vrot.lane.b32.xlu0 %v232, 112
  %v605 = vpop.permute.xlu0 %604
  %606 = vrot.lane.b32.xlu0 %v233, 112
  %v607 = vpop.permute.xlu0 %606
  %608 = vrot.lane.b32.xlu0 %v234, 112
  %v609 = vpop.permute.xlu0 %608
  %vm610 = vcmask 916480
  %v611 = vsel %vm610, %v603, %v605
  %v612 = vsel %vm610, %v605, %v607
  %v613 = vsel %vm610, %v607, %v609
  %v619 = vsel %vm610, %v609, %v603
  %s620 = scalar_lea.vmem %s5, 7
  %v621 = vld [vmem:[%s620] ss:$8 sm:$0xf]
  %v623 = vlaneseq
  %v624 = vshrl.u32 %v623, 7
  %v625 = vsub.s32 0, %v624
  %v626 = vrot.slane %v621, %v625
  %v627 = vlaneseq
  %v628 = vshrl.u32 %v627, 7
  %v629 = vsub.s32 1, %v628
  %v630 = vrot.slane %v621, %v629
  %v631 = vlaneseq
  %v632 = vshrl.u32 %v631, 7
  %v633 = vsub.s32 2, %v632
  %v634 = vrot.slane %v621, %v633
  %v635 = vlaneseq
  %v636 = vshrl.u32 %v635, 7
  %v637 = vsub.s32 3, %v636
  %v638 = vrot.slane %v621, %v637
  %v643 = vmul.f32 %v611, %v626
  %v644 = vmul.f32 %v612, %v630
  %v645 = vmul.f32 %v613, %v634
  %v646 = vmul.f32 %v619, %v638
  %v651 = vrot.slane %v643, 4
  %v652 = vrot.slane %v644, 4
  %v653 = vrot.slane %v645, 4
  %v654 = vrot.slane %v646, 4
  %659 = vst [vmem:[#allocation2 + $0x60] sm:$0xf0] %v651
  %660 = vst [vmem:[#allocation2 + $0x68] sm:$0xf0] %v652
  %661 = vst [vmem:[#allocation2 + $0x70] sm:$0xf0] %v653
  %662 = vst [vmem:[#allocation2 + $0x78] sm:$0xf0] %v654
  %663 = vrot.lane.b32.xlu0 %v231, 111
  %v664 = vpop.permute.xlu0 %663
  %665 = vrot.lane.b32.xlu0 %v232, 111
  %v666 = vpop.permute.xlu0 %665
  %667 = vrot.lane.b32.xlu0 %v233, 111
  %v668 = vpop.permute.xlu0 %667
  %669 = vrot.lane.b32.xlu0 %v234, 111
  %v670 = vpop.permute.xlu0 %669
  %vm671 = vcmask 908288
  %v672 = vsel %vm671, %v664, %v666
  %v673 = vsel %vm671, %v666, %v668
  %v674 = vsel %vm671, %v668, %v670
  %v680 = vsel %vm671, %v670, %v664
  %s681 = scalar_lea.vmem %s5, 32
  %v682 = vld [vmem:[%s681] ss:$8 sm:$0xf]
  %v684 = vlaneseq
  %v685 = vshrl.u32 %v684, 7
  %v686 = vsub.s32 0, %v685
  %v687 = vrot.slane %v682, %v686
  %v688 = vlaneseq
  %v689 = vshrl.u32 %v688, 7
  %v690 = vsub.s32 1, %v689
  %v691 = vrot.slane %v682, %v690
  %v692 = vlaneseq
  %v693 = vshrl.u32 %v692, 7
  %v694 = vsub.s32 2, %v693
  %v695 = vrot.slane %v682, %v694
  %v696 = vlaneseq
  %v697 = vshrl.u32 %v696, 7
  %v698 = vsub.s32 3, %v697
  %v699 = vrot.slane %v682, %v698
  %v704 = vmul.f32 %v672, %v687
  %v705 = vmul.f32 %v673, %v691
  %v706 = vmul.f32 %v674, %v695
  %v707 = vmul.f32 %v680, %v699
  %708 = vst [vmem:[#allocation2 + $0x80] sm:$0xf] %v704
  %709 = vst [vmem:[#allocation2 + $0x88] sm:$0xf] %v705
  %710 = vst [vmem:[#allocation2 + $0x90] sm:$0xf] %v706
  %711 = vst [vmem:[#allocation2 + $0x98] sm:$0xf] %v707
  %v712 = vld [vmem:[%s2] sm:$0xf]
  %v713 = vld [vmem:[#allocation2] sm:$0xff]
  %v714 = vld [vmem:[#allocation2 + $0x8] sm:$0xff]
  %v715 = vld [vmem:[#allocation2 + $0x10] sm:$0xff]
  %v716 = vld [vmem:[#allocation2 + $0x18] sm:$0xff]
  %v717 = vld [vmem:[#allocation2 + $0x20] sm:$0xff]
  %v718 = vld [vmem:[#allocation2 + $0x28] sm:$0xff]
  %v719 = vld [vmem:[#allocation2 + $0x30] sm:$0xff]
  %v720 = vld [vmem:[#allocation2 + $0x38] sm:$0xff]
  %v721 = vld [vmem:[#allocation2 + $0x40] sm:$0xff]
  %v722 = vld [vmem:[#allocation2 + $0x48] sm:$0xff]
  %v723 = vld [vmem:[#allocation2 + $0x50] sm:$0xff]
  %v724 = vld [vmem:[#allocation2 + $0x58] sm:$0xff]
  %v725 = vld [vmem:[#allocation2 + $0x60] sm:$0xff]
  %v726 = vld [vmem:[#allocation2 + $0x68] sm:$0xff]
  %v727 = vld [vmem:[#allocation2 + $0x70] sm:$0xff]
  %v728 = vld [vmem:[#allocation2 + $0x78] sm:$0xff]
  %v729 = vld [vmem:[#allocation2 + $0x80] sm:$0xff]
  %v730 = vld [vmem:[#allocation2 + $0x88] sm:$0xff]
  %v731 = vld [vmem:[#allocation2 + $0x90] sm:$0xff]
  %v732 = vld [vmem:[#allocation2 + $0x98] sm:$0xff]
  %vm733 = vcmask 326656
  %v735 = vsel %vm733, %v712, 0
  %737 = vmatprep.subr.mxu0 %v714
  %738 = vmatpush1.msra.mxu0 %v713
  %739 = vmatprep.subr.mxu0 %v718
  %740 = vmatpush1.msra.mxu0 %v717
  %741 = vmatprep.subr.mxu0 %v722
  %742 = vmatpush1.msra.mxu0 %v721
  %743 = vmatprep.subr.mxu0 %v726
  %744 = vmatpush1.msra.mxu0 %v725
  %745 = vmatprep.subr.mxu0 %v730
  %746 = vmatpush1.msra.mxu0 %v729
  %747 = vmatprep.subr.mxu0 0.0
  %748 = vmatpush1.msra.mxu0 0.0
  %749 = vmatprep.subr.mxu0 0.0
  %750 = vmatpush1.msra.mxu0 0.0
  %751 = vmatprep.subr.mxu0 0.0
  %752 = vmatpush1.msra.mxu0 0.0
  %753 = vmatprep.subr.mxu0 0.0
  %754 = vmatpush1.msra.mxu0 0.0
  %755 = vmatprep.subr.mxu0 0.0
  %756 = vmatpush1.msra.mxu0 0.0
  %757 = vmatprep.subr.mxu0 0.0
  %758 = vmatpush1.msra.mxu0 0.0
  %759 = vmatprep.subr.mxu0 0.0
  %760 = vmatpush1.msra.mxu0 0.0
  %761 = vmatprep.subr.mxu0 0.0
  %762 = vmatpush1.msra.mxu0 0.0
  %763 = vmatprep.subr.mxu0 0.0
  %764 = vmatpush1.msra.mxu0 0.0
  %765 = vmatprep.subr.mxu0 0.0
  %766 = vmatpush1.msra.mxu0 0.0
  %767 = vmatprep.subr.mxu0 0.0
  %768 = vmatpush1.msra.mxu0 0.0
  %769 = vmatprep.subr.mxu0 0.0
  %770 = vmatpush1.msra.mxu0 0.0
  %771 = vmatprep.subr.mxu0 0.0
  %772 = vmatpush1.msra.mxu0 0.0
  %773 = vmatprep.subr.mxu0 0.0
  %774 = vmatpush1.msra.mxu0 0.0
  %775 = vmatprep.subr.mxu0 0.0
  %776 = vmatpush1.msra.mxu0 0.0
  %777 = vmatprep.subr.mxu0 0.0
  %778 = vmatpush1.msra.mxu0 0.0
  %779 = vmatprep.subr.mxu0 0.0
  %780 = vmatpush1.msra.mxu0 0.0
  %781 = vmatprep.subr.mxu0 0.0
  %782 = vmatpush1.msra.mxu0 0.0
  %783 = vmatprep.subr.mxu0 0.0
  %784 = vmatpush1.msra.mxu0 0.0
  %785 = vmatprep.subr.mxu0 0.0
  %786 = vmatpush1.msra.mxu0 0.0
  %787 = vmatprep.subr.mxu0 0.0
  %788 = vmatpush1.msra.mxu0 0.0
  %789 = vmatprep.subr.mxu0 0.0
  %790 = vmatpush1.msra.mxu0 0.0
  %791 = vmatprep.subr.mxu0 0.0
  %792 = vmatpush1.msra.mxu0 0.0
  %793 = vmatprep.subr.mxu0 0.0
  %794 = vmatpush1.msra.mxu0 0.0
  %795 = vmatprep.subr.mxu0 0.0
  %796 = vmatpush1.msra.mxu0 0.0
  %797 = vmatprep.subr.mxu0 0.0
  %798 = vmatpush1.msra.mxu0 0.0
  %799 = vmatprep.subr.mxu0 0.0
  %800 = vmatpush1.msra.mxu0 0.0
  %801 = vmatprep.mubr.f32.mxu0 0.0
  %802 = vmatmul.mubr.f32.gmra.mrb[0].mxu0 %v735
  %v803 = vpop.f32.mrb[0].mxu0
  %v804 = vadd.f32 0.0, %v803
  %v805 = vpop.f32.mrb[0].mxu0
  %v806 = vadd.f32 0.0, %v805
  %807 = vdwg.mxu0
  %808 = vmatprep.subr.mxu0 %v716
  %809 = vmatpush1.msra.mxu0 %v715
  %810 = vmatprep.subr.mxu0 %v720
  %811 = vmatpush1.msra.mxu0 %v719
  %812 = vmatprep.subr.mxu0 %v724
  %813 = vmatpush1.msra.mxu0 %v723
  %814 = vmatprep.subr.mxu0 %v728
  %815 = vmatpush1.msra.mxu0 %v727
  %816 = vmatprep.subr.mxu0 %v732
  %817 = vmatpush1.msra.mxu0 %v731
  %818 = vmatprep.subr.mxu0 0.0
  %819 = vmatpush1.msra.mxu0 0.0
  %820 = vmatprep.subr.mxu0 0.0
  %821 = vmatpush1.msra.mxu0 0.0
  %822 = vmatprep.subr.mxu0 0.0
  %823 = vmatpush1.msra.mxu0 0.0
  %824 = vmatprep.subr.mxu0 0.0
  %825 = vmatpush1.msra.mxu0 0.0
  %826 = vmatprep.subr.mxu0 0.0
  %827 = vmatpush1.msra.mxu0 0.0
  %828 = vmatprep.subr.mxu0 0.0
  %829 = vmatpush1.msra.mxu0 0.0
  %830 = vmatprep.subr.mxu0 0.0
  %831 = vmatpush1.msra.mxu0 0.0
  %832 = vmatprep.subr.mxu0 0.0
  %833 = vmatpush1.msra.mxu0 0.0
  %834 = vmatprep.subr.mxu0 0.0
  %835 = vmatpush1.msra.mxu0 0.0
  %836 = vmatprep.subr.mxu0 0.0
  %837 = vmatpush1.msra.mxu0 0.0
  %838 = vmatprep.subr.mxu0 0.0
  %839 = vmatpush1.msra.mxu0 0.0
  %840 = vmatprep.subr.mxu0 0.0
  %841 = vmatpush1.msra.mxu0 0.0
  %842 = vmatprep.subr.mxu0 0.0
  %843 = vmatpush1.msra.mxu0 0.0
  %844 = vmatprep.subr.mxu0 0.0
  %845 = vmatpush1.msra.mxu0 0.0
  %846 = vmatprep.subr.mxu0 0.0
  %847 = vmatpush1.msra.mxu0 0.0
  %848 = vmatprep.subr.mxu0 0.0
  %849 = vmatpush1.msra.mxu0 0.0
  %850 = vmatprep.subr.mxu0 0.0
  %851 = vmatpush1.msra.mxu0 0.0
  %852 = vmatprep.subr.mxu0 0.0
  %853 = vmatpush1.msra.mxu0 0.0
  %854 = vmatprep.subr.mxu0 0.0
  %855 = vmatpush1.msra.mxu0 0.0
  %856 = vmatprep.subr.mxu0 0.0
  %857 = vmatpush1.msra.mxu0 0.0
  %858 = vmatprep.subr.mxu0 0.0
  %859 = vmatpush1.msra.mxu0 0.0
  %860 = vmatprep.subr.mxu0 0.0
  %861 = vmatpush1.msra.mxu0 0.0
  %862 = vmatprep.subr.mxu0 0.0
  %863 = vmatpush1.msra.mxu0 0.0
  %864 = vmatprep.subr.mxu0 0.0
  %865 = vmatpush1.msra.mxu0 0.0
  %866 = vmatprep.subr.mxu0 0.0
  %867 = vmatpush1.msra.mxu0 0.0
  %868 = vmatprep.subr.mxu0 0.0
  %869 = vmatpush1.msra.mxu0 0.0
  %870 = vmatprep.subr.mxu0 0.0
  %871 = vmatpush1.msra.mxu0 0.0
  %872 = vmatprep.mubr.f32.mxu0 0.0
  %873 = vmatmul.mubr.f32.gmra.mrb[0].mxu0 %v735
  %v874 = vpop.f32.mrb[0].mxu0
  %v875 = vadd.f32 0.0, %v874
  %v876 = vpop.f32.mrb[0].mxu0
  %v877 = vadd.f32 0.0, %v876
  %878 = vdwg.mxu0
  %v879 = vld [vmem:[%s4 + $0x8] sm:$0xf]
  %v880 = vld [vmem:[%s4 + $0xc] sm:$0xf]
  %v881 = vsel %vm180, %v804, 0.0
  %v882 = vsel %vm180, %v806, 0.0
  %v883 = vadd.f32 %v881, %v882
  %v884 = vsel %vm180, %v875, 0.0
  %v885 = vadd.f32 %v883, %v884
  %v886 = vsel %vm180, %v877, 0.0
  %v887 = vadd.f32 %v885, %v886
  %888 = vadd.xlane.f32.xlu0 %v887
  %v889 = vpop.xlane.xlu0 %888
  %v890 = vmul.f32 %v889, %v190
  %v891 = vmul.f32 %v804, %v804
  %v892 = vmul.f32 %v806, %v806
  %v893 = vmul.f32 %v875, %v875
  %v894 = vmul.f32 %v877, %v877
  %v895 = vsel %vm180, %v891, 0.0
  %v896 = vsel %vm180, %v892, 0.0
  %v897 = vadd.f32 %v895, %v896
  %v898 = vsel %vm180, %v893, 0.0
  %v899 = vadd.f32 %v897, %v898
  %v900 = vsel %vm180, %v894, 0.0
  %v901 = vadd.f32 %v899, %v900
  %902 = vadd.xlane.f32.xlu0 %v901
  %v903 = vpop.xlane.xlu0 %902
  %v904 = vmul.f32 %v903, %v190
  %v905 = vmul.f32 %v890, %v890
  %v906 = vsub.f32 %v904, %v905
  %v907 = vadd.f32 %v906, 1e-05
  %v908 = vrsqrt.pop %v907
  %v909 = vmul.f32 %v879, %v908
  %v910 = vmul.f32 %v890, %v909
  %v911 = vsub.f32 %v880, %v910
  %913 = vset.pattern.permute.xlu0 0
  %914 = vperm.xlu0 %913, %v909
  %v915 = vpop.permute.xlu0 %914
  %v917 = vmul.f32 %v804, %v915
  %v918 = vmul.f32 %v806, %v915
  %v919 = vmul.f32 %v875, %v915
  %v920 = vmul.f32 %v877, %v915
  %922 = vset.pattern.permute.xlu0 0
  %923 = vperm.xlu0 %922, %v911
  %v924 = vpop.permute.xlu0 %923
  %v926 = vadd.f32 %v917, %v924
  %v927 = vadd.f32 %v918, %v924
  %v928 = vadd.f32 %v919, %v924
  %v929 = vadd.f32 %v920, %v924
  %v930 = vmax.f32 %v926, 0.0
  %v931 = vmax.f32 %v927, 0.0
  %v932 = vmax.f32 %v928, 0.0
  %v933 = vmax.f32 %v929, 0.0
  %v934 = vld [vmem:[%s3] sm:$0xff]
  %v935 = vld [vmem:[%s3 + $0x8] sm:$0xff]
  %vm936 = vcmask 31744
  %v938 = vsel %vm936, %v934, 0
  %v941 = vsel %vm936, %v935, 0
  %v944 = vsel %vm180, %v930, 0
  %v947 = vsel %vm180, %v931, 0
  %v950 = vsel %vm180, %v932, 0
  %v953 = vsel %vm180, %v933, 0
  %955 = vmatprep.subr.mxu0 %v947
  %956 = vmatpush1.msra.mxu0 %v944
  %957 = vmatprep.subr.mxu0 0.0
  %958 = vmatpush1.msra.mxu0 0.0
  %959 = vmatprep.subr.mxu0 0.0
  %960 = vmatpush1.msra.mxu0 0.0
  %961 = vmatprep.subr.mxu0 0.0
  %962 = vmatpush1.msra.mxu0 0.0
  %963 = vmatprep.subr.mxu0 0.0
  %964 = vmatpush1.msra.mxu0 0.0
  %965 = vmatprep.subr.mxu0 0.0
  %966 = vmatpush1.msra.mxu0 0.0
  %967 = vmatprep.subr.mxu0 0.0
  %968 = vmatpush1.msra.mxu0 0.0
  %969 = vmatprep.subr.mxu0 0.0
  %970 = vmatpush1.msra.mxu0 0.0
  %971 = vmatprep.subr.mxu0 0.0
  %972 = vmatpush1.msra.mxu0 0.0
  %973 = vmatprep.subr.mxu0 0.0
  %974 = vmatpush1.msra.mxu0 0.0
  %975 = vmatprep.subr.mxu0 0.0
  %976 = vmatpush1.msra.mxu0 0.0
  %977 = vmatprep.subr.mxu0 0.0
  %978 = vmatpush1.msra.mxu0 0.0
  %979 = vmatprep.subr.mxu0 0.0
  %980 = vmatpush1.msra.mxu0 0.0
  %981 = vmatprep.subr.mxu0 0.0
  %982 = vmatpush1.msra.mxu0 0.0
  %983 = vmatprep.subr.mxu0 0.0
  %984 = vmatpush1.msra.mxu0 0.0
  %985 = vmatprep.subr.mxu0 0.0
  %986 = vmatpush1.msra.mxu0 0.0
  %987 = vmatprep.subr.mxu0 0.0
  %988 = vmatpush1.msra.mxu0 0.0
  %989 = vmatprep.subr.mxu0 0.0
  %990 = vmatpush1.msra.mxu0 0.0
  %991 = vmatprep.subr.mxu0 0.0
  %992 = vmatpush1.msra.mxu0 0.0
  %993 = vmatprep.subr.mxu0 0.0
  %994 = vmatpush1.msra.mxu0 0.0
  %995 = vmatprep.subr.mxu0 0.0
  %996 = vmatpush1.msra.mxu0 0.0
  %997 = vmatprep.subr.mxu0 0.0
  %998 = vmatpush1.msra.mxu0 0.0
  %999 = vmatprep.subr.mxu0 0.0
  %1000 = vmatpush1.msra.mxu0 0.0
  %1001 = vmatprep.subr.mxu0 0.0
  %1002 = vmatpush1.msra.mxu0 0.0
  %1003 = vmatprep.subr.mxu0 0.0
  %1004 = vmatpush1.msra.mxu0 0.0
  %1005 = vmatprep.subr.mxu0 0.0
  %1006 = vmatpush1.msra.mxu0 0.0
  %1007 = vmatprep.subr.mxu0 0.0
  %1008 = vmatpush1.msra.mxu0 0.0
  %1009 = vmatprep.subr.mxu0 0.0
  %1010 = vmatpush1.msra.mxu0 0.0
  %1011 = vmatprep.subr.mxu0 0.0
  %1012 = vmatpush1.msra.mxu0 0.0
  %1013 = vmatprep.subr.mxu0 0.0
  %1014 = vmatpush1.msra.mxu0 0.0
  %1015 = vmatprep.subr.mxu0 0.0
  %1016 = vmatpush1.msra.mxu0 0.0
  %1017 = vmatprep.subr.mxu0 0.0
  %1018 = vmatpush1.msra.mxu0 0.0
  %1019 = vmatprep.mubr.f32.mxu0 0.0
  %1020 = vmatmul.mubr.f32.gmra.mrb[0].mxu0 %v938
  %v1021 = vpop.f32.mrb[0].mxu0
  %v1022 = vadd.f32 0.0, %v1021
  %v1023 = vpop.f32.mrb[0].mxu0
  %v1024 = vadd.f32 0.0, %v1023
  %1025 = vmatprep.mubr.f32.mxu0 0.0
  %1026 = vmatmul.mubr.f32.gmra.mrb[0].mxu0 %v941
  %v1027 = vpop.f32.mrb[0].mxu0
  %v1028 = vadd.f32 0.0, %v1027
  %v1029 = vpop.f32.mrb[0].mxu0
  %v1030 = vadd.f32 0.0, %v1029
  %1031 = vdwg.mxu0
  %1032 = vmatprep.subr.mxu0 %v953
  %1033 = vmatpush1.msra.mxu0 %v950
  %1034 = vmatprep.subr.mxu0 0.0
  %1035 = vmatpush1.msra.mxu0 0.0
  %1036 = vmatprep.subr.mxu0 0.0
  %1037 = vmatpush1.msra.mxu0 0.0
  %1038 = vmatprep.subr.mxu0 0.0
  %1039 = vmatpush1.msra.mxu0 0.0
  %1040 = vmatprep.subr.mxu0 0.0
  %1041 = vmatpush1.msra.mxu0 0.0
  %1042 = vmatprep.subr.mxu0 0.0
  %1043 = vmatpush1.msra.mxu0 0.0
  %1044 = vmatprep.subr.mxu0 0.0
  %1045 = vmatpush1.msra.mxu0 0.0
  %1046 = vmatprep.subr.mxu0 0.0
  %1047 = vmatpush1.msra.mxu0 0.0
  %1048 = vmatprep.subr.mxu0 0.0
  %1049 = vmatpush1.msra.mxu0 0.0
  %1050 = vmatprep.subr.mxu0 0.0
  %1051 = vmatpush1.msra.mxu0 0.0
  %1052 = vmatprep.subr.mxu0 0.0
  %1053 = vmatpush1.msra.mxu0 0.0
  %1054 = vmatprep.subr.mxu0 0.0
  %1055 = vmatpush1.msra.mxu0 0.0
  %1056 = vmatprep.subr.mxu0 0.0
  %1057 = vmatpush1.msra.mxu0 0.0
  %1058 = vmatprep.subr.mxu0 0.0
  %1059 = vmatpush1.msra.mxu0 0.0
  %1060 = vmatprep.subr.mxu0 0.0
  %1061 = vmatpush1.msra.mxu0 0.0
  %1062 = vmatprep.subr.mxu0 0.0
  %1063 = vmatpush1.msra.mxu0 0.0
  %1064 = vmatprep.subr.mxu0 0.0
  %1065 = vmatpush1.msra.mxu0 0.0
  %1066 = vmatprep.subr.mxu0 0.0
  %1067 = vmatpush1.msra.mxu0 0.0
  %1068 = vmatprep.subr.mxu0 0.0
  %1069 = vmatpush1.msra.mxu0 0.0
  %1070 = vmatprep.subr.mxu0 0.0
  %1071 = vmatpush1.msra.mxu0 0.0
  %1072 = vmatprep.subr.mxu0 0.0
  %1073 = vmatpush1.msra.mxu0 0.0
  %1074 = vmatprep.subr.mxu0 0.0
  %1075 = vmatpush1.msra.mxu0 0.0
  %1076 = vmatprep.subr.mxu0 0.0
  %1077 = vmatpush1.msra.mxu0 0.0
  %1078 = vmatprep.subr.mxu0 0.0
  %1079 = vmatpush1.msra.mxu0 0.0
  %1080 = vmatprep.subr.mxu0 0.0
  %1081 = vmatpush1.msra.mxu0 0.0
  %1082 = vmatprep.subr.mxu0 0.0
  %1083 = vmatpush1.msra.mxu0 0.0
  %1084 = vmatprep.subr.mxu0 0.0
  %1085 = vmatpush1.msra.mxu0 0.0
  %1086 = vmatprep.subr.mxu0 0.0
  %1087 = vmatpush1.msra.mxu0 0.0
  %1088 = vmatprep.subr.mxu0 0.0
  %1089 = vmatpush1.msra.mxu0 0.0
  %1090 = vmatprep.subr.mxu0 0.0
  %1091 = vmatpush1.msra.mxu0 0.0
  %1092 = vmatprep.subr.mxu0 0.0
  %1093 = vmatpush1.msra.mxu0 0.0
  %1094 = vmatprep.subr.mxu0 0.0
  %1095 = vmatpush1.msra.mxu0 0.0
  %1096 = vmatprep.mubr.f32.mxu0 0.0
  %1097 = vmatmul.mubr.f32.gmra.mrb[0].mxu0 %v938
  %v1098 = vpop.f32.mrb[0].mxu0
  %v1099 = vadd.f32 0.0, %v1098
  %v1100 = vpop.f32.mrb[0].mxu0
  %v1101 = vadd.f32 0.0, %v1100
  %1102 = vmatprep.mubr.f32.mxu0 0.0
  %1103 = vmatmul.mubr.f32.gmra.mrb[0].mxu0 %v941
  %v1104 = vpop.f32.mrb[0].mxu0
  %v1105 = vadd.f32 0.0, %v1104
  %v1106 = vpop.f32.mrb[0].mxu0
  %v1107 = vadd.f32 0.0, %v1106
  %1108 = vdwg.mxu0
  %v1109 = vld [vmem:[%s4 + $0x10] sm:$0xff]
  %v1110 = vld [vmem:[%s4 + $0x18] sm:$0xff]
  %v1111 = vld [vmem:[%s4 + $0x20] sm:$0xff]
  %v1112 = vld [vmem:[%s4 + $0x28] sm:$0xff]
  %v1113 = vadd.f32 %v1022, %v1024
  %v1114 = vadd.f32 %v1113, %v1099
  %v1115 = vadd.f32 %v1114, %v1101
  %1116 = vadd.xlane.f32.xlu0 %v1115
  %v1117 = vpop.xlane.xlu0 %1116
  %v1118 = vadd.f32 %v1028, %v1030
  %v1119 = vadd.f32 %v1118, %v1105
  %v1120 = vadd.f32 %v1119, %v1107
  %1121 = vadd.xlane.f32.xlu0 %v1120
  %v1122 = vpop.xlane.xlu0 %1121
  %v1123 = vmul.f32 %v1117, %v190
  %v1124 = vmul.f32 %v1122, %v190
  %v1125 = vmul.f32 %v1022, %v1022
  %v1126 = vmul.f32 %v1024, %v1024
  %v1127 = vmul.f32 %v1099, %v1099
  %v1128 = vmul.f32 %v1101, %v1101
  %v1129 = vmul.f32 %v1028, %v1028
  %v1130 = vmul.f32 %v1030, %v1030
  %v1131 = vmul.f32 %v1105, %v1105
  %v1132 = vmul.f32 %v1107, %v1107
  %v1133 = vadd.f32 %v1125, %v1126
  %v1134 = vadd.f32 %v1133, %v1127
  %v1135 = vadd.f32 %v1134, %v1128
  %1136 = vadd.xlane.f32.xlu0 %v1135
  %v1137 = vpop.xlane.xlu0 %1136
  %v1138 = vadd.f32 %v1129, %v1130
  %v1139 = vadd.f32 %v1138, %v1131
  %v1140 = vadd.f32 %v1139, %v1132
  %1141 = vadd.xlane.f32.xlu0 %v1140
  %v1142 = vpop.xlane.xlu0 %1141
  %v1143 = vmul.f32 %v1137, %v190
  %v1144 = vmul.f32 %v1142, %v190
  %v1145 = vmul.f32 %v1123, %v1123
  %v1146 = vmul.f32 %v1124, %v1124
  %v1147 = vsub.f32 %v1143, %v1145
  %v1148 = vsub.f32 %v1144, %v1146
  %v1149 = vadd.f32 %v1147, 1e-05
  %v1150 = vadd.f32 %v1148, 1e-05
  %v1151 = vrsqrt.pop %v1149
  %v1152 = vrsqrt.pop %v1150
  %v1153 = vmul.f32 %v1109, %v1151
  %v1154 = vmul.f32 %v1110, %v1152
  %v1155 = vmul.f32 %v1123, %v1153
  %v1156 = vmul.f32 %v1124, %v1154
  %v1157 = vsub.f32 %v1111, %v1155
  %v1158 = vsub.f32 %v1112, %v1156
  %1160 = vset.pattern.permute.xlu0 0
  %1161 = vperm.xlu0 %1160, %v1153
  %v1162 = vpop.permute.xlu0 %1161
  %1165 = vset.pattern.permute.xlu0 0
  %1166 = vperm.xlu0 %1165, %v1154
  %v1167 = vpop.permute.xlu0 %1166
  %v1169 = vmul.f32 %v1022, %v1162
  %v1170 = vmul.f32 %v1024, %v1162
  %v1171 = vmul.f32 %v1099, %v1162
  %v1172 = vmul.f32 %v1101, %v1162
  %v1173 = vmul.f32 %v1028, %v1167
  %v1174 = vmul.f32 %v1030, %v1167
  %v1175 = vmul.f32 %v1105, %v1167
  %v1176 = vmul.f32 %v1107, %v1167
  %1178 = vset.pattern.permute.xlu0 0
  %1179 = vperm.xlu0 %1178, %v1157
  %v1180 = vpop.permute.xlu0 %1179
  %1183 = vset.pattern.permute.xlu0 0
  %1184 = vperm.xlu0 %1183, %v1158
  %v1185 = vpop.permute.xlu0 %1184
  %v1187 = vadd.f32 %v1169, %v1180
  %v1188 = vadd.f32 %v1170, %v1180
  %v1189 = vadd.f32 %v1171, %v1180
  %v1190 = vadd.f32 %v1172, %v1180
  %v1191 = vadd.f32 %v1173, %v1185
  %v1192 = vadd.f32 %v1174, %v1185
  %v1193 = vadd.f32 %v1175, %v1185
  %v1194 = vadd.f32 %v1176, %v1185
  %v1195 = vadd.f32 %v1187, %v23
  %v1196 = vadd.f32 %v1188, %v24
  %v1197 = vadd.f32 %v1189, %v25
  %v1198 = vadd.f32 %v1190, %v26
  %v1199 = vadd.f32 %v1191, %v27
  %v1200 = vadd.f32 %v1192, %v28
  %v1201 = vadd.f32 %v1193, %v29
  %v1202 = vadd.f32 %v1194, %v30
  %v1203 = vmax.f32 %v1195, 0.0
  %v1204 = vmax.f32 %v1196, 0.0
  %v1205 = vmax.f32 %v1197, 0.0
  %v1206 = vmax.f32 %v1198, 0.0
  %v1207 = vmax.f32 %v1199, 0.0
  %v1208 = vmax.f32 %v1200, 0.0
  %v1209 = vmax.f32 %v1201, 0.0
  %v1210 = vmax.f32 %v1202, 0.0
  %1211 = vst [vmem:[%s6] sm:$0xff] %v1203
  %1212 = vst [vmem:[%s6 + $0x8] sm:$0xff] %v1204
  %1213 = vst [vmem:[%s6 + $0x10] sm:$0xff] %v1205
  %1214 = vst [vmem:[%s6 + $0x18] sm:$0xff] %v1206
  %1215 = vst [vmem:[%s6 + $0x20] sm:$0xff] %v1207
  %1216 = vst [vmem:[%s6 + $0x28] sm:$0xff] %v1208
  %1217 = vst [vmem:[%s6 + $0x30] sm:$0xff] %v1209
  %1218 = vst [vmem:[%s6 + $0x38] sm:$0xff] %v1210
  // Predicated region
  $region26: #{debottleneck_pallas.1} parent=0 // pred_check
    _
  $region27: #{debottleneck_pallas.1} parent=0 // pred_check_branch
    %1220 = sbr.rel (0) target = $region29
  $region28: #{debottleneck_pallas.1} parent=0 // pred_region
    _
  $region29: #{debottleneck_pallas.1} parent=0 // pred_fallthru
    _
  // Predicated region
  $region30: #{debottleneck_pallas.1} parent=0 // pred_check
    _
  $region31: #{debottleneck_pallas.1} parent=0 // pred_check_branch
    %1222 = sbr.rel (0) target = $region33
  $region32: #{debottleneck_pallas.1} parent=0 // pred_region
    _
  $region33: #{debottleneck_pallas.1} parent=0 // pred_fallthru
    _

</llo_original>
